<compile_context>
chip_gen: v6e
topology: v6e:2x2x1
jax: 0.10.0
libtpu: 0.0.40
codegen_flags: <defaults>
</compile_context>

<pallas_src>
import jax
import jax.numpy as jnp
import numpy as np
from jax import lax
from jax.experimental import pallas as pl
from jax.experimental.pallas import tpu as pltpu


# ---------------------------------------------------------------------------
# helpers
# ---------------------------------------------------------------------------

_MAX_S1_TILE = 256  # rows of S1 per grid step once S1 is large enough to tile


def _round_up(x, m):
    return ((x + m - 1) // m) * m


def _pad_lane_dim(d):
    """Pad a lane (last-dim) size up to a multiple of 128, but only when the
    extra HBM/VMEM traffic is <= 2x (don't blow up tiny dims)."""
    p = _round_up(d, 128)
    return p if p <= 2 * d else d


def _choose_s1_tile(s1):
    """Returns (TS1, padded S1).  Single tile for small/medium S1, otherwise
    _MAX_S1_TILE-row tiles (multiple of 8) with S1 zero-padded to a multiple."""
    s1p = _round_up(s1, 8)
    if s1p <= 2 * _MAX_S1_TILE:
        return s1p, s1p
    return _MAX_S1_TILE, _round_up(s1p, _MAX_S1_TILE)


def _vmem_budget():
    """Per-generation VMEM sizing.

    budget: bytes the block chooser may plan for (blocks + live temporaries).
    limit:  value passed to CompilerParams(vmem_limit_bytes=...), leaving
            headroom for compiler-internal scratch.
    v5e/v6e: 128 MiB physical -> ~70 MiB budget / ~109 MiB limit.
    v7x:      64 MiB physical -> ~35 MiB budget /  ~54 MiB limit.
    """
    cap = 64 * 1024 * 1024
    try:
        info = pltpu.get_tpu_info()
        cap = int(getattr(info, "vmem_capacity_bytes", cap) or cap)
    except Exception:
        pass
    return int(cap * 0.55), int(cap * 0.85)


def _choose_batch_block(B, TS1, S2p, Hp, in_itemsize, mask_itemsize, budget,
                        with_alpha):
    """Pick BB (batch elements per grid step) against the VMEM budget."""
    # Pipelined HBM<->VMEM blocks are double-buffered (x2):
    pipelined = 2 * (
        TS1 * Hp * in_itemsize                              # h1 block
        + S2p * Hp * in_itemsize                            # h2 block
        + S2p * mask_itemsize                               # mask block
        + TS1 * Hp * in_itemsize                            # alpha_seq2 out block
        + (TS1 * S2p * in_itemsize if with_alpha else 0)    # alpha out block
    )
    # In-kernel f32 temporaries are NOT double-buffered: ~3 concurrent
    # (TS1, S2p) slabs (scores / e_x / alpha) plus the f32 second-matmul result.
    live = 4 * (3 * TS1 * S2p + TS1 * Hp)
    per_b = pipelined + live
    bb = max(1, min(B, budget // max(per_b, 1)))
    while B % bb:
        bb -= 1
    return bb


# ---------------------------------------------------------------------------
# kernel
# ---------------------------------------------------------------------------

def _make_kernel(with_alpha):
    def kernel(h1_ref, h2_ref, mask_ref, *out_refs):
        # Per-block tiles:
        #   h1_ref:   (BB, TS1, Hp)   h2_ref: (BB, S2p, Hp)   mask_ref: (BB, 1, S2p)
        #   out_ref:  (BB, TS1, Hp)   alpha_ref (optional): (BB, TS1, S2p)
        h1 = h1_ref[...]                            # keep input dtype for the MXU
        h2 = h2_ref[...]
        m = mask_ref[...].astype(jnp.float32)       # (BB, 1, S2p), broadcasts over TS1

        # scores[b] = h1[b] @ h2[b]^T -> (BB, TS1, S2p); batched contraction on
        # the last dims (no explicit transpose), f32 accumulation on the MXU.
        scores = lax.dot_general(
            h1, h2,
            dimension_numbers=(((2,), (2,)), ((0,), (0,))),
            preferred_element_type=jnp.float32,
        )

        # masked softmax over the last axis, in f32.
        x = scores * m
        e_x = jnp.exp(x - jnp.max(x, axis=-1, keepdims=True)) * m
        denom = jnp.sum(e_x, axis=-1, keepdims=True) + 1e-6
        # EUP approximate reciprocal: alpha rows sum to 1 only to ~1e-3 relative.
        alpha = e_x * pl.reciprocal(denom, approx=True)

        # Single low-precision cast, reused for the store and the second matmul.
        alpha_lo = alpha.astype(h2.dtype)

        if with_alpha:
            out_ref, alpha_ref = out_refs
            alpha_ref[...] = alpha_lo.astype(alpha_ref.dtype)
        else:
            (out_ref,) = out_refs

        # out[b] = alpha[b] @ h2[b] -> (BB, TS1, Hp)
        out = lax.dot_general(
            alpha_lo, h2,
            dimension_numbers=(((2,), (1,)), ((0,), (0,))),
            preferred_element_type=jnp.float32,
        )
        out_ref[...] = out.astype(out_ref.dtype)

    return kernel


# ---------------------------------------------------------------------------
# wrapper
# ---------------------------------------------------------------------------

def seq_to_seq_atten(h1, h2, h2_mask, return_alpha=True):
    """h1: (S1, B, H), h2: (S2, B, H), h2_mask: (B, S2).
    Returns (alpha_seq2: (S1, B, H), alpha: (B, S1, S2) or None)."""
    S1, B, H = h1.shape
    S2 = h2.shape[0]
    dtype = h1.dtype

    Hp = _pad_lane_dim(H)
    S2p = _pad_lane_dim(S2)
    TS1, S1p = _choose_s1_tile(S1)

    budget, vmem_limit = _vmem_budget()
    BB = _choose_batch_block(
        B, TS1, S2p, Hp,
        jnp.dtype(dtype).itemsize, jnp.dtype(h2_mask.dtype).itemsize,
        budget, return_alpha)
    assert B % BB == 0

    # Batch-major inside the kernel.
    # TODO(synk): drop these transposes if the surrounding model is batch-major.
    h1_b = jnp.transpose(h1, (1, 0, 2))            # (B, S1, H)
    h2_b = jnp.transpose(h2, (1, 0, 2))            # (B, S2, H)
    mask_b = h2_mask.reshape(B, 1, S2)             # (B, 1, S2)

    # Zero-pad to the padded sizes (padded mask columns are 0 -> e_x is exactly
    # 0 there; padded h1 rows / H columns are sliced off below).
    if (S1p, Hp) != (S1, H):
        h1_b = jnp.pad(h1_b, ((0, 0), (0, S1p - S1), (0, Hp - H)))
    if (S2p, Hp) != (S2, H):
        h2_b = jnp.pad(h2_b, ((0, 0), (0, S2p - S2), (0, Hp - H)))
    if S2p != S2:
        mask_b = jnp.pad(mask_b, ((0, 0), (0, 0), (0, S2p - S2)))

    grid = (B // BB, S1p // TS1)   # S1 innermost -> h2/mask block reused across it

    in_specs = [
        pl.BlockSpec((BB, TS1, Hp), lambda b, s: (b, s, 0)),
        pl.BlockSpec((BB, S2p, Hp), lambda b, s: (b, 0, 0)),
        # Sublane-1 block equals the full dim -> layout-safe for any BB; the
        # mask is tiny so the padded sublane costs nothing measurable.
        pl.BlockSpec((BB, 1, S2p), lambda b, s: (b, 0, 0)),
    ]
    out_shapes = [jax.ShapeDtypeStruct((B, S1p, Hp), dtype)]
    out_specs = [pl.BlockSpec((BB, TS1, Hp), lambda b, s: (b, s, 0))]
    if return_alpha:
        out_shapes.append(jax.ShapeDtypeStruct((B, S1p, S2p), dtype))
        out_specs.append(pl.BlockSpec((BB, TS1, S2p), lambda b, s: (b, s, 0)))

    grid_spec = pltpu.PrefetchScalarGridSpec(
        num_scalar_prefetch=0,
        grid=grid,
        in_specs=in_specs,
        out_specs=out_specs,
    )

    results = pl.pallas_call(
        _make_kernel(return_alpha),
        out_shape=out_shapes,
        grid_spec=grid_spec,
        compiler_params=pltpu.CompilerParams(
            dimension_semantics=("parallel", "parallel"),
            vmem_limit_bytes=vmem_limit,
        ),
    )(h1_b, h2_b, mask_b)

    out_b = results[0]
    alpha_seq2 = jnp.transpose(out_b[:, :S1, :H], (1, 0, 2))   # back to (S1, B, H)
    if not return_alpha:
        return alpha_seq2, None
    alpha = results[1][:, :S1, :S2]
    return alpha_seq2, alpha


# ---------------------------------------------------------------------------
# reference + test
# ---------------------------------------------------------------------------

def _reference(h1, h2, h2_mask):
    # pure-JAX reference with identical semantics (exact division)
    h1_b = jnp.transpose(h1, (1, 0, 2)).astype(jnp.float32)
    h2_b = jnp.transpose(h2, (1, 0, 2)).astype(jnp.float32)
    m = h2_mask[:, None, :].astype(jnp.float32)
    scores = jnp.einsum('bqh,bkh->bqk', h1_b, h2_b)
    x = scores * m
    e_x = jnp.exp(x - jnp.max(x, axis=-1, keepdims=True)) * m
    alpha = e_x / (jnp.sum(e_x, axis=-1, keepdims=True) + 1e-6)
    out = jnp.einsum('bqk,bkh->bqh', alpha, h2_b)
    return jnp.transpose(out, (1, 0, 2)), alpha


def _run_case(key, S1, S2, B, H):
    k1, k2, k3 = jax.random.split(key, 3)
    h1 = jax.random.normal(k1, (S1, B, H), dtype=jnp.float32)
    h2 = jax.random.normal(k2, (S2, B, H), dtype=jnp.float32)
    h2_mask = (jax.random.uniform(k3, (B, S2)) > 0.25).astype(jnp.float32)
    h2_mask = h2_mask.at[:, 0].set(1.0)    # at least one valid position per row

    alpha_seq2, alpha = seq_to_seq_atten(h1, h2, h2_mask)
    jax.block_until_ready((alpha_seq2, alpha))

    ref_out, ref_alpha = _reference(h1, h2, h2_mask)
    # tolerance loosened slightly for the EUP approximate reciprocal
    np.testing.assert_allclose(np.asarray(alpha), np.asarray(ref_alpha),
                               rtol=5e-3, atol=5e-3)
    np.testing.assert_allclose(np.asarray(alpha_seq2), np.asarray(ref_out),
                               rtol=5e-3, atol=5e-3)


if __name__ == "__main__":
    key = jax.random.PRNGKey(0)
    kA, kB = jax.random.split(key)

    # Small shapes consistent with the module (seq=8, batch=2, hidden=32).
    _run_case(kA, S1=8, S2=8, B=2, H=32)

    # Exercise the S1-tiling + lane-padding path (S1 > 512, S2/H padded to 128).
    _run_case(kB, S1=520, S2=130, B=2, H=72)

    print("KERNEL_OK")
</pallas_src>

<mosaic_0001>
module attributes {stable_mosaic.version = 11 : i64} {
  func.func @kernel(%arg0: i32, %arg1: i32, %arg2: memref<2x8x32xf32, #tpu.memory_space<vmem>>, %arg3: memref<2x8x32xf32, #tpu.memory_space<vmem>>, %arg4: memref<2x1x8xf32, #tpu.memory_space<vmem>>, %arg5: memref<2x8x32xf32, #tpu.memory_space<vmem>>, %arg6: memref<2x8x8xf32, #tpu.memory_space<vmem>>) attributes {dimension_semantics = [#tpu.dimension_semantics<parallel>, #tpu.dimension_semantics<parallel>], iteration_bounds = array<i64: 1, 1>, scalar_prefetch = 0 : i64, scratch_operands = 0 : i64, tpu.core_type = #tpu.core_type<tc>, window_params = [{transform_indices = @transform_0, window_bounds = array<i64: 2, 8, 32>}, {transform_indices = @transform_1, window_bounds = array<i64: 2, 8, 32>}, {transform_indices = @transform_2, window_bounds = array<i64: 2, 1, 8>}, {transform_indices = @transform_3, window_bounds = array<i64: 2, 8, 32>}, {transform_indices = @transform_4, window_bounds = array<i64: 2, 8, 8>}]} {
    %c0 = arith.constant 0 : index
    %c0_0 = arith.constant 0 : index
    %c0_1 = arith.constant 0 : index
    %0 = vector.load %arg2[%c0, %c0_0, %c0_1] : memref<2x8x32xf32, #tpu.memory_space<vmem>>, vector<2x8x32xf32>
    %c0_2 = arith.constant 0 : index
    %c0_3 = arith.constant 0 : index
    %c0_4 = arith.constant 0 : index
    %1 = vector.load %arg3[%c0_2, %c0_3, %c0_4] : memref<2x8x32xf32, #tpu.memory_space<vmem>>, vector<2x8x32xf32>
    %c0_5 = arith.constant 0 : index
    %c0_6 = arith.constant 0 : index
    %c0_7 = arith.constant 0 : index
    %2 = vector.load %arg4[%c0_5, %c0_6, %c0_7] : memref<2x1x8xf32, #tpu.memory_space<vmem>>, vector<2x1x8xf32>
    %cst = arith.constant dense<0.000000e+00> : vector<2x8x8xf32>
    %3 = tpu.matmul %0, %1, %cst {dimension_numbers = #tpu.dot_dimension_numbers<[2], [2], [1], [1], [0, 0, 0, 1, 1, 1], [0], [0]>} : vector<2x8x32xf32>, vector<2x8x32xf32>, vector<2x8x8xf32> -> vector<2x8x8xf32>
    %4 = vector.broadcast %2 : vector<2x1x8xf32> to vector<2x8x8xf32>
    %5 = arith.mulf %3, %4 : vector<2x8x8xf32>
    %cst_8 = arith.constant dense<0xFF800000> : vector<2x8xf32>
    %6 = vector.multi_reduction <maximumf>, %5, %cst_8 [2] : vector<2x8x8xf32> to vector<2x8xf32>
    %7 = vector.shape_cast %6 : vector<2x8xf32> to vector<2x8x1xf32>
    %8 = vector.broadcast %7 : vector<2x8x1xf32> to vector<2x8x8xf32>
    %9 = arith.subf %5, %8 : vector<2x8x8xf32>
    %10 = math.exp %9 : vector<2x8x8xf32>
    %11 = vector.broadcast %2 : vector<2x1x8xf32> to vector<2x8x8xf32>
    %12 = arith.mulf %10, %11 : vector<2x8x8xf32>
    %cst_9 = arith.constant dense<0.000000e+00> : vector<2x8xf32>
    %13 = vector.multi_reduction <add>, %12, %cst_9 [2] : vector<2x8x8xf32> to vector<2x8xf32>
    %14 = vector.shape_cast %13 : vector<2x8xf32> to vector<2x8x1xf32>
    %cst_10 = arith.constant 9.99999997E-7 : f32
    %15 = vector.broadcast %cst_10 : f32 to vector<2x8x1xf32>
    %16 = arith.addf %14, %15 : vector<2x8x1xf32>
    %17 = tpu.reciprocal %16 {approx = true} : vector<2x8x1xf32> -> vector<2x8x1xf32>
    %18 = vector.broadcast %17 : vector<2x8x1xf32> to vector<2x8x8xf32>
    %19 = arith.mulf %12, %18 : vector<2x8x8xf32>
    %c0_11 = arith.constant 0 : index
    %c0_12 = arith.constant 0 : index
    %c0_13 = arith.constant 0 : index
    %20 = vector.load %arg6[%c0_11, %c0_12, %c0_13] : memref<2x8x8xf32, #tpu.memory_space<vmem>>, vector<2x8x8xf32>
    tpu.vector_store %arg6[%c0_11, %c0_12, %c0_13], %19 {strides = array<i32>} : memref<2x8x8xf32, #tpu.memory_space<vmem>>, vector<2x8x8xf32>,
    %cst_14 = arith.constant dense<0.000000e+00> : vector<2x8x32xf32>
    %21 = tpu.matmul %19, %1, %cst_14 {dimension_numbers = #tpu.dot_dimension_numbers<[2], [1], [1], [2], [0, 0, 0, 1, 1, 2], [0], [0]>} : vector<2x8x8xf32>, vector<2x8x32xf32>, vector<2x8x32xf32> -> vector<2x8x32xf32>
    %c0_15 = arith.constant 0 : index
    %c0_16 = arith.constant 0 : index
    %c0_17 = arith.constant 0 : index
    %22 = vector.load %arg5[%c0_15, %c0_16, %c0_17] : memref<2x8x32xf32, #tpu.memory_space<vmem>>, vector<2x8x32xf32>
    tpu.vector_store %arg5[%c0_15, %c0_16, %c0_17], %21 {strides = array<i32>} : memref<2x8x32xf32, #tpu.memory_space<vmem>>, vector<2x8x32xf32>,
    return
  }
  func.func @transform_0(%arg0: i32, %arg1: i32) -> (i32, i32, i32) {
    %c0_i32 = arith.constant 0 : i32
    %c0_i32_0 = arith.constant 0 : i32
    return %arg0, %arg1, %c0_i32 : i32, i32, i32
  }
  func.func @transform_1(%arg0: i32, %arg1: i32) -> (i32, i32, i32) {
    %c0_i32 = arith.constant 0 : i32
    %c0_i32_0 = arith.constant 0 : i32
    %c0_i32_1 = arith.constant 0 : i32
    return %arg0, %c0_i32, %c0_i32_0 : i32, i32, i32
  }
  func.func @transform_2(%arg0: i32, %arg1: i32) -> (i32, i32, i32) {
    %c0_i32 = arith.constant 0 : i32
    %c0_i32_0 = arith.constant 0 : i32
    %c0_i32_1 = arith.constant 0 : i32
    return %arg0, %c0_i32, %c0_i32_0 : i32, i32, i32
  }
  func.func @transform_3(%arg0: i32, %arg1: i32) -> (i32, i32, i32) {
    %c0_i32 = arith.constant 0 : i32
    %c0_i32_0 = arith.constant 0 : i32
    return %arg0, %arg1, %c0_i32 : i32, i32, i32
  }
  func.func @transform_4(%arg0: i32, %arg1: i32) -> (i32, i32, i32) {
    %c0_i32 = arith.constant 0 : i32
    %c0_i32_0 = arith.constant 0 : i32
    return %arg0, %arg1, %c0_i32 : i32, i32, i32
  }
}

</mosaic_0001>

<llo_original>
// kernel: tpu_custom_call.1
$region0: #{tpu_custom_call.1}
  #allocation0 [shape = 'u32[]', space=smem, size = 0x4, offset = 0x4, fixed_abs, tag = 'smem constant byte address 0x4 - core index']
  #allocation1 [shape = 'u32[144,128]{1,0:T(1,128)}', space=vmem, size = 0x12000, scoped, tag = 'internal scratch']
  %s0 = inlined_call_operand.hbm [shape: f32[2,8,32], index: 0, kind: input, shape index: {}]
  %s1 = inlined_call_operand.hbm [shape: f32[2,8,32], index: 1, kind: input, shape index: {}]
  %s2 = inlined_call_operand.vmem [shape: f32[2,1,8], index: 2, kind: input, shape index: {}]
  %s3 = inlined_call_operand.hbm [shape: f32[2,8,32], index: 3, kind: output, shape index: {0}]
  %s4 = inlined_call_operand.hbm [shape: f32[2,8,8], index: 4, kind: output, shape index: {1}]
  %5 = xla_tuple %s3, %s4
  %s6 = sld [smem:[#allocation0]]
  $region38: #{tpu_custom_call.1} parent=0
    _
  %s8 = ssub.s32 1, %s6
  %s9 = scalar_select 0, %s8, %s6
  $region1: #{tpu_custom_call.1} parent=0
    #allocation2 [shape = 'u8[8192]{0}', space=vmem, size = 0x2000, scoped, tag = 'input window, operand 0, single buffered']
    #allocation3 [shape = 's32[1]{0}', space=sflag, size = 0x4, scoped, tag = 'scoped memory for tpu_custom_call.1']
    #allocation4 [shape = 's32[1]{0}', space=sflag, size = 0x4, scoped, tag = 'scoped memory for tpu_custom_call.1']
    #allocation5 [shape = 'u8[8192]{0}', space=vmem, size = 0x2000, scoped, tag = 'input window, operand 1, single buffered']
    #allocation6 [shape = 's32[1]{0}', space=sflag, size = 0x4, scoped, tag = 'scoped memory for tpu_custom_call.1']
    #allocation7 [shape = 'u8[8192]{0}', space=vmem, size = 0x2000, scoped, tag = 'output window, operand 0, single buffered']
    #allocation8 [shape = 'u8[8192]{0}', space=vmem, size = 0x2000, scoped, tag = 'output window, operand 1, single buffered']
    #allocation9 [shape = 's32[1]{0}', space=sflag, size = 0x4, scoped, tag = 'scoped memory for tpu_custom_call.1']
    %10 = vsyncpa [#allocation3], 0
    %11 = vsyncpa [#allocation6], 0
    %12 = vsyncpa [#allocation4], 0
    %13 = vsyncpa [#allocation9], 0
    // Predicated region
    $region2: #{tpu_custom_call.1} parent=1 // pred_check
      _
    $region3: #{tpu_custom_call.1} parent=1 // pred_check_branch
      %15 = sbr.rel (0) target = $region5
    $region4: #{tpu_custom_call.1} parent=1 // pred_region
      %s17 = ssub.s32 256, 256
      %18 = vsyncadd [#allocation3], %s17
      %s19 = sshll.u32 [#allocation2], 4
      %s20 = int_to_ptr.vmem [resolvable:$true] %s19
      %25 = dma.hbm_to_vmem [thread:$0]  %s0, 256, %s20, [#allocation3], 128, 128, 8
    $region5: #{tpu_custom_call.1} parent=1 // pred_fallthru
      _
    // Predicated region
    $region6: #{tpu_custom_call.1} parent=1 // pred_check
      _
    $region7: #{tpu_custom_call.1} parent=1 // pred_check_branch
      %27 = sbr.rel (0) target = $region9
    $region8: #{tpu_custom_call.1} parent=1 // pred_region
      %s29 = ssub.s32 256, 256
      %30 = vsyncadd [#allocation6], %s29
      %s31 = sshll.u32 [#allocation5], 4
      %s32 = int_to_ptr.vmem [resolvable:$true] %s31
      %37 = dma.hbm_to_vmem [thread:$0]  %s1, 256, %s32, [#allocation6], 128, 128, 8
    $region9: #{tpu_custom_call.1} parent=1 // pred_fallthru
      _
    // Predicated region
    $region10: #{tpu_custom_call.1} parent=1 // pred_check
      _
    $region11: #{tpu_custom_call.1} parent=1 // pred_check_branch
      %39 = sbr.rel (0) target = $region13
    $region12: #{tpu_custom_call.1} parent=1 // pred_region
      _
    $region13: #{tpu_custom_call.1} parent=1 // pred_fallthru
      _
    // Predicated region
    $region14: #{tpu_custom_call.1} parent=1 // pred_check
      _
    $region15: #{tpu_custom_call.1} parent=1 // pred_check_branch
      %41 = sbr.rel (0) target = $region17
    $region16: #{tpu_custom_call.1} parent=1 // pred_region
      %42 = dma.done [#allocation3], 256
    $region17: #{tpu_custom_call.1} parent=1 // pred_fallthru
      _
    // Predicated region
    $region18: #{tpu_custom_call.1} parent=1 // pred_check
      _
    $region19: #{tpu_custom_call.1} parent=1 // pred_check_branch
      %44 = sbr.rel (0) target = $region21
    $region20: #{tpu_custom_call.1} parent=1 // pred_region
      %45 = dma.done [#allocation6], 256
    $region21: #{tpu_custom_call.1} parent=1 // pred_fallthru
      _
    %v46 = vld [vmem:[#allocation2] sm:$0xff]
    %v47 = vld [vmem:[#allocation2 + $0x8] sm:$0xff]
    %v48 = vld [vmem:[#allocation5] sm:$0xff]
    %v49 = vld [vmem:[#allocation5 + $0x8] sm:$0xff]
    %v50 = vld [vmem:[%s2] sm:$0x1]
    %v51 = vld [vmem:[%s2 + $0x1] sm:$0x1]
    %vm52 = vcmask 261120
    %v54 = vsel %vm52, %v46, 0
    %v57 = vsel %vm52, %v48, 0
    %59 = vmatprep.subr.mxu0 0.0
    %60 = vmatpush1.xpose.msra.mxu0 0.0
    %61 = vmatprep.subr.mxu0 0.0
    %62 = vmatpush1.xpose.msra.mxu0 0.0
    %63 = vmatprep.subr.mxu0 0.0
    %64 = vmatpush1.xpose.msra.mxu0 0.0
    %65 = vmatprep.subr.mxu0 0.0
    %66 = vmatpush1.xpose.msra.mxu0 0.0
    %67 = vmatprep.subr.mxu0 0.0
    %68 = vmatpush1.xpose.msra.mxu0 0.0
    %69 = vmatprep.subr.mxu0 0.0
    %70 = vmatpush1.xpose.msra.mxu0 0.0
    %71 = vmatprep.subr.mxu0 0.0
    %72 = vmatpush1.xpose.msra.mxu0 0.0
    %73 = vmatprep.subr.mxu0 0.0
    %74 = vmatpush1.xpose.msra.mxu0 0.0
    %75 = vmatprep.subr.mxu0 0.0
    %76 = vmatpush1.xpose.msra.mxu0 0.0
    %77 = vmatprep.subr.mxu0 0.0
    %78 = vmatpush1.xpose.msra.mxu0 0.0
    %79 = vmatprep.subr.mxu0 0.0
    %80 = vmatpush1.xpose.msra.mxu0 0.0
    %81 = vmatprep.subr.mxu0 0.0
    %82 = vmatpush1.xpose.msra.mxu0 0.0
    %83 = vmatprep.subr.mxu0 0.0
    %84 = vmatpush1.xpose.msra.mxu0 0.0
    %85 = vmatprep.subr.mxu0 0.0
    %86 = vmatpush1.xpose.msra.mxu0 0.0
    %87 = vmatprep.subr.mxu0 0.0
    %88 = vmatpush1.xpose.msra.mxu0 0.0
    %89 = vmatprep.subr.mxu0 0.0
    %90 = vmatpush1.xpose.msra.mxu0 %v57
    %91 = vmatprep.subr.mxu0 0.0
    %92 = vmatpush2.xpose.msra.mxu0 0.0
    %93 = vmatprep.subr.mxu0 0.0
    %94 = vmatpush2.xpose.msra.mxu0 0.0
    %95 = vmatprep.subr.mxu0 0.0
    %96 = vmatpush2.xpose.msra.mxu0 0.0
    %97 = vmatprep.subr.mxu0 0.0
    %98 = vmatpush2.xpose.msra.mxu0 0.0
    %99 = vmatprep.subr.mxu0 0.0
    %100 = vmatpush2.xpose.msra.mxu0 0.0
    %101 = vmatprep.subr.mxu0 0.0
    %102 = vmatpush2.xpose.msra.mxu0 0.0
    %103 = vmatprep.subr.mxu0 0.0
    %104 = vmatpush2.xpose.msra.mxu0 0.0
    %105 = vmatprep.subr.mxu0 0.0
    %106 = vmatpush2.xpose.msra.mxu0 0.0
    %107 = vmatprep.subr.mxu0 0.0
    %108 = vmatpush2.xpose.msra.mxu0 0.0
    %109 = vmatprep.subr.mxu0 0.0
    %110 = vmatpush2.xpose.msra.mxu0 0.0
    %111 = vmatprep.subr.mxu0 0.0
    %112 = vmatpush2.xpose.msra.mxu0 0.0
    %113 = vmatprep.subr.mxu0 0.0
    %114 = vmatpush2.xpose.msra.mxu0 0.0
    %115 = vmatprep.subr.mxu0 0.0
    %116 = vmatpush2.xpose.msra.mxu0 0.0
    %117 = vmatprep.subr.mxu0 0.0
    %118 = vmatpush2.xpose.msra.mxu0 0.0
    %119 = vmatprep.subr.mxu0 0.0
    %120 = vmatpush2.xpose.msra.mxu0 0.0
    %121 = vmatprep.subr.mxu0 0.0
    %122 = vmatpush2.xpose.msra.mxu0 0.0
    %123 = vmatprep.mubr.f32.mxu0 0.0
    %124 = vmatmul.mubr.f32.gmra.mxu0 %v54
    %v125 = vpop.f32.mrf.mxu0
    %v126 = vadd.f32 0.0, %v125
    %v127 = vpop.f32.mrf.mxu0
    %128 = vdwg.mxu0
    %v130 = vsel %vm52, %v47, 0
    %v133 = vsel %vm52, %v49, 0
    %135 = vmatprep.subr.mxu0 0.0
    %136 = vmatpush1.xpose.msra.mxu0 0.0
    %137 = vmatprep.subr.mxu0 0.0
    %138 = vmatpush1.xpose.msra.mxu0 0.0
    %139 = vmatprep.subr.mxu0 0.0
    %140 = vmatpush1.xpose.msra.mxu0 0.0
    %141 = vmatprep.subr.mxu0 0.0
    %142 = vmatpush1.xpose.msra.mxu0 0.0
    %143 = vmatprep.subr.mxu0 0.0
    %144 = vmatpush1.xpose.msra.mxu0 0.0
    %145 = vmatprep.subr.mxu0 0.0
    %146 = vmatpush1.xpose.msra.mxu0 0.0
    %147 = vmatprep.subr.mxu0 0.0
    %148 = vmatpush1.xpose.msra.mxu0 0.0
    %149 = vmatprep.subr.mxu0 0.0
    %150 = vmatpush1.xpose.msra.mxu0 0.0
    %151 = vmatprep.subr.mxu0 0.0
    %152 = vmatpush1.xpose.msra.mxu0 0.0
    %153 = vmatprep.subr.mxu0 0.0
    %154 = vmatpush1.xpose.msra.mxu0 0.0
    %155 = vmatprep.subr.mxu0 0.0
    %156 = vmatpush1.xpose.msra.mxu0 0.0
    %157 = vmatprep.subr.mxu0 0.0
    %158 = vmatpush1.xpose.msra.mxu0 0.0
    %159 = vmatprep.subr.mxu0 0.0
    %160 = vmatpush1.xpose.msra.mxu0 0.0
    %161 = vmatprep.subr.mxu0 0.0
    %162 = vmatpush1.xpose.msra.mxu0 0.0
    %163 = vmatprep.subr.mxu0 0.0
    %164 = vmatpush1.xpose.msra.mxu0 0.0
    %165 = vmatprep.subr.mxu0 0.0
    %166 = vmatpush1.xpose.msra.mxu0 %v133
    %167 = vmatprep.subr.mxu0 0.0
    %168 = vmatpush2.xpose.msra.mxu0 0.0
    %169 = vmatprep.subr.mxu0 0.0
    %170 = vmatpush2.xpose.msra.mxu0 0.0
    %171 = vmatprep.subr.mxu0 0.0
    %172 = vmatpush2.xpose.msra.mxu0 0.0
    %173 = vmatprep.subr.mxu0 0.0
    %174 = vmatpush2.xpose.msra.mxu0 0.0
    %175 = vmatprep.subr.mxu0 0.0
    %176 = vmatpush2.xpose.msra.mxu0 0.0
    %177 = vmatprep.subr.mxu0 0.0
    %178 = vmatpush2.xpose.msra.mxu0 0.0
    %179 = vmatprep.subr.mxu0 0.0
    %180 = vmatpush2.xpose.msra.mxu0 0.0
    %181 = vmatprep.subr.mxu0 0.0
    %182 = vmatpush2.xpose.msra.mxu0 0.0
    %183 = vmatprep.subr.mxu0 0.0
    %184 = vmatpush2.xpose.msra.mxu0 0.0
    %185 = vmatprep.subr.mxu0 0.0
    %186 = vmatpush2.xpose.msra.mxu0 0.0
    %187 = vmatprep.subr.mxu0 0.0
    %188 = vmatpush2.xpose.msra.mxu0 0.0
    %189 = vmatprep.subr.mxu0 0.0
    %190 = vmatpush2.xpose.msra.mxu0 0.0
    %191 = vmatprep.subr.mxu0 0.0
    %192 = vmatpush2.xpose.msra.mxu0 0.0
    %193 = vmatprep.subr.mxu0 0.0
    %194 = vmatpush2.xpose.msra.mxu0 0.0
    %195 = vmatprep.subr.mxu0 0.0
    %196 = vmatpush2.xpose.msra.mxu0 0.0
    %197 = vmatprep.subr.mxu0 0.0
    %198 = vmatpush2.xpose.msra.mxu0 0.0
    %199 = vmatprep.mubr.f32.mxu0 0.0
    %200 = vmatmul.mubr.f32.gmra.mxu0 %v130
    %v201 = vpop.f32.mrf.mxu0
    %v202 = vadd.f32 0.0, %v201
    %v203 = vpop.f32.mrf.mxu0
    %204 = vdwg.mxu0
    %v207 = vlaneseq
    %v208 = vshrl.u32 %v207, 7
    %v209 = vsub.s32 0, %v208
    %v210 = vrot.slane %v50, %v209
    %v211 = vlaneseq
    %v212 = vshrl.u32 %v211, 7
    %v213 = vsub.s32 0, %v212
    %v214 = vrot.slane %v51, %v213
    %v217 = vmul.f32 %v126, %v210
    %v218 = vmul.f32 %v202, %v214
    %vm219 = vcmask 64512
    %v220 = vsel %vm219, %v217, -inf
    %221 = vmax.xlane.f32.xlu0 %v220
    %v222 = vpop.xlane.xlu0 %221
    %v223 = vsel %vm219, %v218, -inf
    %224 = vmax.xlane.f32.xlu0 %v223
    %v225 = vpop.xlane.xlu0 %224
    %v226 = vsub.f32 %v217, %v222
    %v227 = vsub.f32 %v218, %v225
    %v228 = vmul.f32 %v226, 1.442695
    %v229 = vpow.pop %v228
    %v230 = vmul.f32 %v227, 1.442695
    %v231 = vpow.pop %v230
    %v232 = vmul.f32 %v229, %v210
    %v233 = vmul.f32 %v231, %v214
    %v234 = vsel %vm219, %v232, 0.0
    %235 = vadd.xlane.f32.xlu0 %v234
    %v236 = vpop.xlane.xlu0 %235
    %v237 = vsel %vm219, %v233, 0.0
    %238 = vadd.xlane.f32.xlu0 %v237
    %v239 = vpop.xlane.xlu0 %238
    %v240 = vadd.f32 %v236, 1e-06
    %v241 = vadd.f32 %v239, 1e-06
    %v242 = vrcp.pop %v240
    %v243 = vrcp.pop %v241
    %v244 = vmul.f32 %v232, %v242
    %v245 = vmul.f32 %v233, %v243
    %246 = vst.msk [vmem:[#allocation8] sm:$0xff] %vm219, %v244
    %247 = vst.msk [vmem:[#allocation8 + $0x8] sm:$0xff] %vm219, %v245
    %v249 = vsel %vm219, %v244, 0
    %251 = vmatprep.subr.mxu0 0.0
    %252 = vmatpush1.msra.mxu0 0.0
    %253 = vmatprep.subr.mxu0 0.0
    %254 = vmatpush1.msra.mxu0 0.0
    %255 = vmatprep.subr.mxu0 0.0
    %256 = vmatpush1.msra.mxu0 0.0
    %257 = vmatprep.subr.mxu0 0.0
    %258 = vmatpush1.msra.mxu0 0.0
    %259 = vmatprep.subr.mxu0 0.0
    %260 = vmatpush1.msra.mxu0 0.0
    %261 = vmatprep.subr.mxu0 0.0
    %262 = vmatpush1.msra.mxu0 0.0
    %263 = vmatprep.subr.mxu0 0.0
    %264 = vmatpush1.msra.mxu0 0.0
    %265 = vmatprep.subr.mxu0 0.0
    %266 = vmatpush1.msra.mxu0 0.0
    %267 = vmatprep.subr.mxu0 0.0
    %268 = vmatpush1.msra.mxu0 0.0
    %269 = vmatprep.subr.mxu0 0.0
    %270 = vmatpush1.msra.mxu0 0.0
    %271 = vmatprep.subr.mxu0 0.0
    %272 = vmatpush1.msra.mxu0 0.0
    %273 = vmatprep.subr.mxu0 0.0
    %274 = vmatpush1.msra.mxu0 0.0
    %275 = vmatprep.subr.mxu0 0.0
    %276 = vmatpush1.msra.mxu0 0.0
    %277 = vmatprep.subr.mxu0 0.0
    %278 = vmatpush1.msra.mxu0 0.0
    %279 = vmatprep.subr.mxu0 0.0
    %280 = vmatpush1.msra.mxu0 0.0
    %281 = vmatprep.subr.mxu0 0.0
    %282 = vmatpush1.msra.mxu0 %v48
    %283 = vmatprep.subr.mxu0 0.0
    %284 = vmatpush2.msra.mxu0 0.0
    %285 = vmatprep.subr.mxu0 0.0
    %286 = vmatpush2.msra.mxu0 0.0
    %287 = vmatprep.subr.mxu0 0.0
    %288 = vmatpush2.msra.mxu0 0.0
    %289 = vmatprep.subr.mxu0 0.0
    %290 = vmatpush2.msra.mxu0 0.0
    %291 = vmatprep.subr.mxu0 0.0
    %292 = vmatpush2.msra.mxu0 0.0
    %293 = vmatprep.subr.mxu0 0.0
    %294 = vmatpush2.msra.mxu0 0.0
    %295 = vmatprep.subr.mxu0 0.0
    %296 = vmatpush2.msra.mxu0 0.0
    %297 = vmatprep.subr.mxu0 0.0
    %298 = vmatpush2.msra.mxu0 0.0
    %299 = vmatprep.subr.mxu0 0.0
    %300 = vmatpush2.msra.mxu0 0.0
    %301 = vmatprep.subr.mxu0 0.0
    %302 = vmatpush2.msra.mxu0 0.0
    %303 = vmatprep.subr.mxu0 0.0
    %304 = vmatpush2.msra.mxu0 0.0
    %305 = vmatprep.subr.mxu0 0.0
    %306 = vmatpush2.msra.mxu0 0.0
    %307 = vmatprep.subr.mxu0 0.0
    %308 = vmatpush2.msra.mxu0 0.0
    %309 = vmatprep.subr.mxu0 0.0
    %310 = vmatpush2.msra.mxu0 0.0
    %311 = vmatprep.subr.mxu0 0.0
    %312 = vmatpush2.msra.mxu0 0.0
    %313 = vmatprep.subr.mxu0 0.0
    %314 = vmatpush2.msra.mxu0 0.0
    %315 = vmatprep.mubr.f32.mxu0 0.0
    %316 = vmatmul.mubr.f32.gmra.mxu0 %v249
    %v317 = vpop.f32.mrf.mxu0
    %v318 = vadd.f32 0.0, %v317
    %v319 = vpop.f32.mrf.mxu0
    %320 = vdwg.mxu0
    %v322 = vsel %vm219, %v245, 0
    %324 = vmatprep.subr.mxu0 0.0
    %325 = vmatpush1.msra.mxu0 0.0
    %326 = vmatprep.subr.mxu0 0.0
    %327 = vmatpush1.msra.mxu0 0.0
    %328 = vmatprep.subr.mxu0 0.0
    %329 = vmatpush1.msra.mxu0 0.0
    %330 = vmatprep.subr.mxu0 0.0
    %331 = vmatpush1.msra.mxu0 0.0
    %332 = vmatprep.subr.mxu0 0.0
    %333 = vmatpush1.msra.mxu0 0.0
    %334 = vmatprep.subr.mxu0 0.0
    %335 = vmatpush1.msra.mxu0 0.0
    %336 = vmatprep.subr.mxu0 0.0
    %337 = vmatpush1.msra.mxu0 0.0
    %338 = vmatprep.subr.mxu0 0.0
    %339 = vmatpush1.msra.mxu0 0.0
    %340 = vmatprep.subr.mxu0 0.0
    %341 = vmatpush1.msra.mxu0 0.0
    %342 = vmatprep.subr.mxu0 0.0
    %343 = vmatpush1.msra.mxu0 0.0
    %344 = vmatprep.subr.mxu0 0.0
    %345 = vmatpush1.msra.mxu0 0.0
    %346 = vmatprep.subr.mxu0 0.0
    %347 = vmatpush1.msra.mxu0 0.0
    %348 = vmatprep.subr.mxu0 0.0
    %349 = vmatpush1.msra.mxu0 0.0
    %350 = vmatprep.subr.mxu0 0.0
    %351 = vmatpush1.msra.mxu0 0.0
    %352 = vmatprep.subr.mxu0 0.0
    %353 = vmatpush1.msra.mxu0 0.0
    %354 = vmatprep.subr.mxu0 0.0
    %355 = vmatpush1.msra.mxu0 %v49
    %356 = vmatprep.subr.mxu0 0.0
    %357 = vmatpush2.msra.mxu0 0.0
    %358 = vmatprep.subr.mxu0 0.0
    %359 = vmatpush2.msra.mxu0 0.0
    %360 = vmatprep.subr.mxu0 0.0
    %361 = vmatpush2.msra.mxu0 0.0
    %362 = vmatprep.subr.mxu0 0.0
    %363 = vmatpush2.msra.mxu0 0.0
    %364 = vmatprep.subr.mxu0 0.0
    %365 = vmatpush2.msra.mxu0 0.0
    %366 = vmatprep.subr.mxu0 0.0
    %367 = vmatpush2.msra.mxu0 0.0
    %368 = vmatprep.subr.mxu0 0.0
    %369 = vmatpush2.msra.mxu0 0.0
    %370 = vmatprep.subr.mxu0 0.0
    %371 = vmatpush2.msra.mxu0 0.0
    %372 = vmatprep.subr.mxu0 0.0
    %373 = vmatpush2.msra.mxu0 0.0
    %374 = vmatprep.subr.mxu0 0.0
    %375 = vmatpush2.msra.mxu0 0.0
    %376 = vmatprep.subr.mxu0 0.0
    %377 = vmatpush2.msra.mxu0 0.0
    %378 = vmatprep.subr.mxu0 0.0
    %379 = vmatpush2.msra.mxu0 0.0
    %380 = vmatprep.subr.mxu0 0.0
    %381 = vmatpush2.msra.mxu0 0.0
    %382 = vmatprep.subr.mxu0 0.0
    %383 = vmatpush2.msra.mxu0 0.0
    %384 = vmatprep.subr.mxu0 0.0
    %385 = vmatpush2.msra.mxu0 0.0
    %386 = vmatprep.subr.mxu0 0.0
    %387 = vmatpush2.msra.mxu0 0.0
    %388 = vmatprep.mubr.f32.mxu0 0.0
    %389 = vmatmul.mubr.f32.gmra.mxu0 %v322
    %v390 = vpop.f32.mrf.mxu0
    %v391 = vadd.f32 0.0, %v390
    %v392 = vpop.f32.mrf.mxu0
    %393 = vdwg.mxu0
    %394 = vst.msk [vmem:[#allocation7] sm:$0xff] %vm52, %v318
    %395 = vst.msk [vmem:[#allocation7 + $0x8] sm:$0xff] %vm52, %v391
    // Predicated region
    $region22: #{tpu_custom_call.1} parent=1 // pred_check
      _
    $region23: #{tpu_custom_call.1} parent=1 // pred_check_branch
      %397 = sbr.rel (0) target = $region25
    $region24: #{tpu_custom_call.1} parent=1 // pred_region
      %s399 = ssub.s32 256, 256
      %400 = vsyncadd [#allocation4], %s399
      %s401 = sshll.u32 [#allocation7], 4
      %s402 = int_to_ptr.vmem [resolvable:$true] %s401
      %407 = dma.vmem_to_hbm [thread:$0]  %s402, 256, %s3, [#allocation4], 128, 128, 8
    $region25: #{tpu_custom_call.1} parent=1 // pred_fallthru
      _
    // Predicated region
    $region26: #{tpu_custom_call.1} parent=1 // pred_check
      _
    $region27: #{tpu_custom_call.1} parent=1 // pred_check_branch
      %409 = sbr.rel (0) target = $region29
    $region28: #{tpu_custom_call.1} parent=1 // pred_region
      %s411 = ssub.s32 256, 256
      %412 = vsyncadd [#allocation9], %s411
      %s413 = sshll.u32 [#allocation8], 4
      %s414 = int_to_ptr.vmem [resolvable:$true] %s413
      %419 = dma.vmem_to_hbm [thread:$0]  %s414, 256, %s4, [#allocation9], 128, 128, 8
    $region29: #{tpu_custom_call.1} parent=1 // pred_fallthru
      _
    // Predicated region
    $region30: #{tpu_custom_call.1} parent=1 // pred_check
      _
    $region31: #{tpu_custom_call.1} parent=1 // pred_check_branch
      %421 = sbr.rel (0) target = $region33
    $region32: #{tpu_custom_call.1} parent=1 // pred_region
      %422 = dma.done [#allocation4], 256
    $region33: #{tpu_custom_call.1} parent=1 // pred_fallthru
      _
    // Predicated region
    $region34: #{tpu_custom_call.1} parent=1 // pred_check
      _
    $region35: #{tpu_custom_call.1} parent=1 // pred_check_branch
      %424 = sbr.rel (0) target = $region37
    $region36: #{tpu_custom_call.1} parent=1 // pred_region
      %425 = dma.done [#allocation9], 256
    $region37: #{tpu_custom_call.1} parent=1 // pred_fallthru
      _
    %426 = vsyncpa [#allocation3], 1
    %427 = vsyncpa [#allocation6], 1
    %428 = vsyncpa [#allocation4], 1
    %429 = vsyncpa [#allocation9], 1

</llo_original>
